<compile_context>
chip_gen: v7x
topology: tpu7x:2x2x1
jax: 0.10.0
libtpu: 0.0.40
codegen_flags: <defaults>
</compile_context>

<pallas_src>
import math
import functools

import jax
import jax.numpy as jnp
from jax.experimental import pallas as pl
from jax.experimental.pallas import tpu as pltpu


def _round_up(x, m):
    return ((x + m - 1) // m) * m


def _default_bf16_epilogue():
    """Use a bf16 bias/ReLU epilogue only where the VPU has native bf16 (v6e/v7x)."""
    try:
        kind = jax.devices()[0].device_kind.lower()
    except Exception:
        return True
    return "v5" not in kind


def _choose_tile(B, block_b):
    """Pick the batch tile.

    Constraints:
      * TB is a multiple of 128 so the (TB, 1) fc3 result reshapes into a
        lane-dense (TB//128, 128) output block.
      * In the multi-step regime TB is a multiple of 1024 so TB//128 is a
        multiple of 8 (sublane granularity of the f32 output blocks).
      * Keep >= 4 grid steps when the batch is big enough, so the "parallel"
        batch axis spans both TensorCores on v7x (harmless on v5e/v6e).
    """
    block_b = max(1024, _round_up(block_b, 1024))
    if B >= 4 * 1024:
        return min(block_b, _round_up(pl.cdiv(B, 4), 1024))
    # Small batch: a single (possibly padded) tile; only needs 128 granularity.
    return min(block_b, _round_up(B, 128))


def value_net_kernel(x_ref, w1_ref, b1_ref, w2_ref, b2_ref, w3_ref, b3_ref, o_ref,
                     *, bf16_epilogue):
    # x tile: (TB, S) f32/bf16 streamed; resident weights: w1/w2 bf16,
    # b1/b2/w3 f32; b3 scalar in SMEM.  MXU accumulation is always f32.
    x = x_ref[...].astype(jnp.bfloat16)         # in-kernel cast, hidden under MXU
    h1 = jnp.dot(x, w1_ref[...], preferred_element_type=jnp.float32)
    if bf16_epilogue:
        h1 = jnp.maximum(h1.astype(jnp.bfloat16) + b1_ref[...].astype(jnp.bfloat16), 0.0)
    else:
        h1 = jnp.maximum(h1 + b1_ref[...], 0.0).astype(jnp.bfloat16)
    h2 = jnp.dot(h1, w2_ref[...], preferred_element_type=jnp.float32)
    if bf16_epilogue:
        h2 = jnp.maximum(h2.astype(jnp.bfloat16) + b2_ref[...].astype(jnp.bfloat16), 0.0)
    else:
        h2 = jnp.maximum(h2 + b2_ref[...], 0.0)
    # fc3 has out_features=1: VPU multiply (promotes to f32) + XLU lane reduce
    # instead of a 1-column MXU matmul.
    v = jnp.sum(h2 * w3_ref[...], axis=-1, keepdims=True) + b3_ref[0, 0]
    # Lane-dense store: (TB, 1) -> (TB//128, 128).  The sublane->lane relayout
    # runs on the XLU (idle here) and avoids masked partial stores + a padded
    # output buffer.  The wrapper undoes it with reshape(-1, 1)[:B].
    o_ref[...] = v.reshape(o_ref.shape)


@functools.partial(jax.jit, static_argnames=("block_b", "bf16_epilogue"))
def value_network_forward(x, params, *, block_b=4096, bf16_epilogue=None):
    """Fused ValueNetwork forward pass.

    x: f32 (or bf16) [B, state_dim]
    params: dict from prepare_params(): w1[S,128] bf16, b1[1,128] f32,
            w2[128,64] bf16, b2[1,64] f32, w3[1,64] f32, b3[1,1] f32
    returns: f32[B, 1]
    """
    if bf16_epilogue is None:
        bf16_epilogue = _default_bf16_epilogue()

    B, S = x.shape
    TB = _choose_tile(B, block_b)
    n_steps = pl.cdiv(B, TB)            # ragged last tile: no full-array pad pass
    out_rows = (n_steps * TB) // 128    # lane-dense output: 128 batch rows per line

    if B < TB:
        # Tiny batches only: pad up to one tile (negligible cost) so the single
        # block never exceeds the array.  Large batches are never padded.
        x = jnp.pad(x, ((0, TB - B), (0, 0)))

    flops = 2 * B * (S * 128 + 128 * 64 + 64)
    bytes_accessed = x.size * x.dtype.itemsize + B * 4
    for p in params.values():
        bytes_accessed += p.size * p.dtype.itemsize

    out = pl.pallas_call(
        functools.partial(value_net_kernel, bf16_epilogue=bf16_epilogue),
        out_shape=jax.ShapeDtypeStruct((out_rows, 128), jnp.float32),
        grid_spec=pltpu.PrefetchScalarGridSpec(
            num_scalar_prefetch=0,
            grid=(n_steps,),
            in_specs=[
                pl.BlockSpec((TB, S), lambda i: (i, 0)),      # x tile (streamed)
                pl.BlockSpec((S, 128), lambda i: (0, 0)),     # w1 (resident)
                pl.BlockSpec((1, 128), lambda i: (0, 0)),     # b1
                pl.BlockSpec((128, 64), lambda i: (0, 0)),    # w2
                pl.BlockSpec((1, 64), lambda i: (0, 0)),      # b2
                pl.BlockSpec((1, 64), lambda i: (0, 0)),      # w3 as a row
                pl.BlockSpec((1, 1), lambda i: (0, 0),
                             memory_space=pltpu.MemorySpace.SMEM),  # b3 scalar
            ],
            out_specs=pl.BlockSpec((TB // 128, 128), lambda i: (i, 0)),
        ),
        compiler_params=pltpu.CompilerParams(
            dimension_semantics=("parallel",),
            vmem_limit_bytes=32 * 1024 * 1024),
        cost_estimate=pl.CostEstimate(
            flops=int(flops), transcendentals=0, bytes_accessed=int(bytes_accessed)),
    )(x, params["w1"], params["b1"], params["w2"], params["b2"],
      params["w3"], params["b3"])

    # Undo the lane-dense packing (free view-level reshape/slice) and drop
    # padded / ragged-tail rows.
    return out.reshape(-1, 1)[:B]


def init_params(key, state_dim):
    """Deterministic init mirroring PyTorch nn.Linear default (uniform +-1/sqrt(fan_in))."""
    def linear(key, fan_in, fan_out):
        kw, kb = jax.random.split(key)
        bound = 1.0 / math.sqrt(fan_in)
        w = jax.random.uniform(kw, (fan_in, fan_out), jnp.float32, -bound, bound)
        b = jax.random.uniform(kb, (1, fan_out), jnp.float32, -bound, bound)
        return w, b

    k1, k2, k3 = jax.random.split(key, 3)
    w1, b1 = linear(k1, state_dim, 128)
    w2, b2 = linear(k2, 128, 64)
    w3, b3 = linear(k3, 64, 1)
    return {"w1": w1, "b1": b1, "w2": w2, "b2": b2, "w3": w3, "b3": b3}


def prepare_params(p):
    """Kernel layout: bf16 matmul weights, fc3 weight as a (1, 64) f32 row, b3 scalar."""
    return {
        "w1": p["w1"].astype(jnp.bfloat16),
        "b1": p["b1"].astype(jnp.float32),
        "w2": p["w2"].astype(jnp.bfloat16),
        "b2": p["b2"].astype(jnp.float32),
        "w3": p["w3"].reshape(1, -1).astype(jnp.float32),   # (64,1) -> (1,64)
        "b3": p["b3"].reshape(1, 1).astype(jnp.float32),
    }


def reference_forward_f32(x, p):
    """Full-f32 reference (matches the PyTorch module numerics)."""
    h1 = jnp.maximum(x @ p["w1"] + p["b1"], 0.0)
    h2 = jnp.maximum(h1 @ p["w2"] + p["b2"], 0.0)
    return h2 @ p["w3"] + p["b3"]


def reference_forward_kernel_numerics(x, kp, bf16_epilogue):
    """Reference mirroring the kernel's exact bf16/f32 numerics."""
    h1 = jnp.dot(x.astype(jnp.bfloat16), kp["w1"], preferred_element_type=jnp.float32)
    if bf16_epilogue:
        h1 = jnp.maximum(h1.astype(jnp.bfloat16) + kp["b1"].astype(jnp.bfloat16), 0.0)
    else:
        h1 = jnp.maximum(h1 + kp["b1"], 0.0).astype(jnp.bfloat16)
    h2 = jnp.dot(h1, kp["w2"], preferred_element_type=jnp.float32)
    if bf16_epilogue:
        h2 = jnp.maximum(h2.astype(jnp.bfloat16) + kp["b2"].astype(jnp.bfloat16), 0.0)
    else:
        h2 = jnp.maximum(h2 + kp["b2"], 0.0)
    return jnp.sum(h2 * kp["w3"], axis=-1, keepdims=True) + kp["b3"]


if __name__ == "__main__":
    key = jax.random.PRNGKey(0)
    k_params, k_x = jax.random.split(key)

    B, STATE_DIM = 8, 32
    params = init_params(k_params, STATE_DIM)
    kparams = prepare_params(params)
    x = jax.random.normal(k_x, (B, STATE_DIM), jnp.float32)

    bf16_ep = _default_bf16_epilogue()
    out = value_network_forward(x, kparams, bf16_epilogue=bf16_ep)
    out = jax.block_until_ready(out)
    assert out.shape == (B, 1), out.shape

    # Tight check vs. a reference with identical bf16-in / f32-accum numerics.
    ref_kernel = reference_forward_kernel_numerics(x, kparams, bf16_ep)
    assert jnp.allclose(out, ref_kernel, atol=1e-4, rtol=1e-3), \
        "mismatch vs kernel-numerics reference"

    # Loose check vs. the full-f32 PyTorch-equivalent reference (bf16 weight /
    # epilogue casts introduce ~1e-3-level deviation).
    ref_f32 = reference_forward_f32(x, params)
    assert jnp.allclose(out, ref_f32, atol=5e-2, rtol=5e-2), "mismatch vs f32 reference"

    print("KERNEL_OK")
</pallas_src>

<mosaic_0001>
module attributes {stable_mosaic.version = 11 : i64} {
  func.func @value_net_kernel(%arg0: i32, %arg1: memref<128x32xf32, #tpu.memory_space<vmem>>, %arg2: memref<32x128xbf16, #tpu.memory_space<vmem>>, %arg3: memref<1x128xf32, #tpu.memory_space<vmem>>, %arg4: memref<128x64xbf16, #tpu.memory_space<vmem>>, %arg5: memref<1x64xf32, #tpu.memory_space<vmem>>, %arg6: memref<1x64xf32, #tpu.memory_space<vmem>>, %arg7: memref<1x1xf32, #tpu.memory_space<smem>>, %arg8: memref<1x128xf32, #tpu.memory_space<vmem>>) attributes {dimension_semantics = [#tpu.dimension_semantics<parallel>], iteration_bounds = array<i64: 1>, scalar_prefetch = 0 : i64, scratch_operands = 0 : i64, tpu.core_type = #tpu.core_type<tc>, window_params = [{transform_indices = @transform_0, window_bounds = array<i64: 128, 32>}, {pipeline_mode = #tpu.pipeline_mode<synchronous>, transform_indices = @transform_1, window_bounds = array<i64: 32, 128>}, {pipeline_mode = #tpu.pipeline_mode<synchronous>, transform_indices = @transform_2, window_bounds = array<i64: 1, 128>}, {pipeline_mode = #tpu.pipeline_mode<synchronous>, transform_indices = @transform_3, window_bounds = array<i64: 128, 64>}, {pipeline_mode = #tpu.pipeline_mode<synchronous>, transform_indices = @transform_4, window_bounds = array<i64: 1, 64>}, {pipeline_mode = #tpu.pipeline_mode<synchronous>, transform_indices = @transform_5, window_bounds = array<i64: 1, 64>}, {transform_indices = @transform_6, window_bounds = array<i64: 1, 1>}, {transform_indices = @transform_7, window_bounds = array<i64: 1, 128>}]} {
    %c0 = arith.constant 0 : index
    %c0_0 = arith.constant 0 : index
    %0 = vector.load %arg1[%c0, %c0_0] : memref<128x32xf32, #tpu.memory_space<vmem>>, vector<128x32xf32>
    %1 = arith.truncf %0 : vector<128x32xf32> to vector<128x32xbf16>
    %c0_1 = arith.constant 0 : index
    %c0_2 = arith.constant 0 : index
    %2 = vector.load %arg2[%c0_1, %c0_2] : memref<32x128xbf16, #tpu.memory_space<vmem>>, vector<32x128xbf16>
    %cst = arith.constant dense<0.000000e+00> : vector<128x128xf32>
    %3 = tpu.matmul %1, %2, %cst {dimension_numbers = #tpu.dot_dimension_numbers<[1], [0], [0], [1], [0, 0, 1, 1], [], []>} : vector<128x32xbf16>, vector<32x128xbf16>, vector<128x128xf32> -> vector<128x128xf32>
    %4 = arith.truncf %3 : vector<128x128xf32> to vector<128x128xbf16>
    %c0_3 = arith.constant 0 : index
    %c0_4 = arith.constant 0 : index
    %5 = vector.load %arg3[%c0_3, %c0_4] : memref<1x128xf32, #tpu.memory_space<vmem>>, vector<1x128xf32>
    %6 = arith.truncf %5 : vector<1x128xf32> to vector<1x128xbf16>
    %7 = vector.broadcast %6 : vector<1x128xbf16> to vector<128x128xbf16>
    %8 = arith.addf %4, %7 : vector<128x128xbf16>
    %cst_5 = arith.constant 0.000000e+00 : bf16
    %9 = vector.broadcast %cst_5 : bf16 to vector<128x128xbf16>
    %10 = arith.maximumf %8, %9 : vector<128x128xbf16>
    %c0_6 = arith.constant 0 : index
    %c0_7 = arith.constant 0 : index
    %11 = vector.load %arg4[%c0_6, %c0_7] : memref<128x64xbf16, #tpu.memory_space<vmem>>, vector<128x64xbf16>
    %cst_8 = arith.constant dense<0.000000e+00> : vector<128x64xf32>
    %12 = tpu.matmul %10, %11, %cst_8 {dimension_numbers = #tpu.dot_dimension_numbers<[1], [0], [0], [1], [0, 0, 1, 1], [], []>} : vector<128x128xbf16>, vector<128x64xbf16>, vector<128x64xf32> -> vector<128x64xf32>
    %13 = arith.truncf %12 : vector<128x64xf32> to vector<128x64xbf16>
    %c0_9 = arith.constant 0 : index
    %c0_10 = arith.constant 0 : index
    %14 = vector.load %arg5[%c0_9, %c0_10] : memref<1x64xf32, #tpu.memory_space<vmem>>, vector<1x64xf32>
    %15 = arith.truncf %14 : vector<1x64xf32> to vector<1x64xbf16>
    %16 = vector.broadcast %15 : vector<1x64xbf16> to vector<128x64xbf16>
    %17 = arith.addf %13, %16 : vector<128x64xbf16>
    %cst_11 = arith.constant 0.000000e+00 : bf16
    %18 = vector.broadcast %cst_11 : bf16 to vector<128x64xbf16>
    %19 = arith.maximumf %17, %18 : vector<128x64xbf16>
    %c0_12 = arith.constant 0 : index
    %c0_13 = arith.constant 0 : index
    %20 = vector.load %arg6[%c0_12, %c0_13] : memref<1x64xf32, #tpu.memory_space<vmem>>, vector<1x64xf32>
    %21 = arith.extf %19 : vector<128x64xbf16> to vector<128x64xf32>
    %22 = vector.broadcast %20 : vector<1x64xf32> to vector<128x64xf32>
    %23 = arith.mulf %21, %22 : vector<128x64xf32>
    %cst_14 = arith.constant dense<0.000000e+00> : vector<128xf32>
    %24 = vector.multi_reduction <add>, %23, %cst_14 [1] : vector<128x64xf32> to vector<128xf32>
    %25 = vector.shape_cast %24 : vector<128xf32> to vector<128x1xf32>
    %c0_15 = arith.constant 0 : index
    %c0_16 = arith.constant 0 : index
    %26 = memref.load %arg7[%c0_15, %c0_16] : memref<1x1xf32, #tpu.memory_space<smem>>
    %27 = vector.broadcast %26 : f32 to vector<128x1xf32>
    %28 = arith.addf %25, %27 : vector<128x1xf32>
    %29 = vector.shape_cast %28 : vector<128x1xf32> to vector<1x128xf32>
    %c0_17 = arith.constant 0 : index
    %c0_18 = arith.constant 0 : index
    %30 = vector.load %arg8[%c0_17, %c0_18] : memref<1x128xf32, #tpu.memory_space<vmem>>, vector<1x128xf32>
    tpu.vector_store %arg8[%c0_17, %c0_18], %29 {strides = array<i32>} : memref<1x128xf32, #tpu.memory_space<vmem>>, vector<1x128xf32>,
    return
  }
  func.func @transform_0(%arg0: i32) -> (i32, i32) {
    %c0_i32 = arith.constant 0 : i32
    %c0_i32_0 = arith.constant 0 : i32
    return %arg0, %c0_i32 : i32, i32
  }
  func.func @transform_1(%arg0: i32) -> (i32, i32) {
    %c0_i32 = arith.constant 0 : i32
    %c0_i32_0 = arith.constant 0 : i32
    %c0_i32_1 = arith.constant 0 : i32
    return %c0_i32, %c0_i32_0 : i32, i32
  }
  func.func @transform_2(%arg0: i32) -> (i32, i32) {
    %c0_i32 = arith.constant 0 : i32
    %c0_i32_0 = arith.constant 0 : i32
    %c0_i32_1 = arith.constant 0 : i32
    return %c0_i32, %c0_i32_0 : i32, i32
  }
  func.func @transform_3(%arg0: i32) -> (i32, i32) {
    %c0_i32 = arith.constant 0 : i32
    %c0_i32_0 = arith.constant 0 : i32
    %c0_i32_1 = arith.constant 0 : i32
    return %c0_i32, %c0_i32_0 : i32, i32
  }
  func.func @transform_4(%arg0: i32) -> (i32, i32) {
    %c0_i32 = arith.constant 0 : i32
    %c0_i32_0 = arith.constant 0 : i32
    %c0_i32_1 = arith.constant 0 : i32
    return %c0_i32, %c0_i32_0 : i32, i32
  }
  func.func @transform_5(%arg0: i32) -> (i32, i32) {
    %c0_i32 = arith.constant 0 : i32
    %c0_i32_0 = arith.constant 0 : i32
    %c0_i32_1 = arith.constant 0 : i32
    return %c0_i32, %c0_i32_0 : i32, i32
  }
  func.func @transform_6(%arg0: i32) -> (i32, i32) {
    %c0_i32 = arith.constant 0 : i32
    %c0_i32_0 = arith.constant 0 : i32
    %c0_i32_1 = arith.constant 0 : i32
    return %c0_i32, %c0_i32_0 : i32, i32
  }
  func.func @transform_7(%arg0: i32) -> (i32, i32) {
    %c0_i32 = arith.constant 0 : i32
    %c0_i32_0 = arith.constant 0 : i32
    return %arg0, %c0_i32 : i32, i32
  }
}

</mosaic_0001>

<llo_original>
// kernel: value_network_forward.1
$region0: #{value_network_forward.1}
  #allocation0 [shape = 'u32[]', space=smem, size = 0x4, offset = 0x4, fixed_abs, tag = 'smem constant byte address 0x4 - core index']
  #allocation1 [shape = 'u32[144,128]{1,0:T(1,128)}', space=vmem, size = 0x12000, scoped, tag = 'internal scratch']
  #allocation2 [shape = 'f32[1,1]{1,0:T(1,128)S(6)}', space=smem, size = 0x200, scoped, tag = 'scoped memory for value_network_forward.1']
  %s0 = inlined_call_operand.vmem [shape: f32[128,32], index: 0, kind: input, shape index: {}]
  %s1 = inlined_call_operand.vmem [shape: bf16[32,128], index: 1, kind: input, shape index: {}]
  %s2 = inlined_call_operand.vmem [shape: f32[1,128], index: 2, kind: input, shape index: {}]
  %s3 = inlined_call_operand.vmem [shape: bf16[128,64], index: 3, kind: input, shape index: {}]
  %s4 = inlined_call_operand.vmem [shape: f32[1,64], index: 4, kind: input, shape index: {}]
  %s5 = inlined_call_operand.vmem [shape: f32[1,64], index: 5, kind: input, shape index: {}]
  %s6 = inlined_call_operand.<no memory space> [shape: f32[1,1], index: 6, kind: input, shape index: {}]
  %s7 = inlined_call_operand.vmem [shape: f32[1,128], index: 7, kind: output, shape index: {}]
  %s8 = sld [smem:[#allocation0]]
  $region38: #{value_network_forward.1} parent=0
    _
  %s10 = ssub.s32 1, %s8
  %s11 = scalar_select 0, %s10, %s8
  %12 = sst [smem:[#allocation2]] %s6
  // Predicated region
  $region2: #{value_network_forward.1} parent=0 // pred_check
    _
  $region3: #{value_network_forward.1} parent=0 // pred_check_branch
    %14 = sbr.rel (0) target = $region5
  $region4: #{value_network_forward.1} parent=0 // pred_region
    _
  $region5: #{value_network_forward.1} parent=0 // pred_fallthru
    _
  // Predicated region
  $region6: #{value_network_forward.1} parent=0 // pred_check
    _
  $region7: #{value_network_forward.1} parent=0 // pred_check_branch
    %16 = sbr.rel (0) target = $region9
  $region8: #{value_network_forward.1} parent=0 // pred_region
    _
  $region9: #{value_network_forward.1} parent=0 // pred_fallthru
    _
  // Predicated region
  $region10: #{value_network_forward.1} parent=0 // pred_check
    _
  $region11: #{value_network_forward.1} parent=0 // pred_check_branch
    %18 = sbr.rel (0) target = $region13
  $region12: #{value_network_forward.1} parent=0 // pred_region
    _
  $region13: #{value_network_forward.1} parent=0 // pred_fallthru
    _
  // Predicated region
  $region14: #{value_network_forward.1} parent=0 // pred_check
    _
  $region15: #{value_network_forward.1} parent=0 // pred_check_branch
    %20 = sbr.rel (0) target = $region17
  $region16: #{value_network_forward.1} parent=0 // pred_region
    _
  $region17: #{value_network_forward.1} parent=0 // pred_fallthru
    _
  // Predicated region
  $region18: #{value_network_forward.1} parent=0 // pred_check
    _
  $region19: #{value_network_forward.1} parent=0 // pred_check_branch
    %22 = sbr.rel (0) target = $region21
  $region20: #{value_network_forward.1} parent=0 // pred_region
    _
  $region21: #{value_network_forward.1} parent=0 // pred_fallthru
    _
  // Predicated region
  $region22: #{value_network_forward.1} parent=0 // pred_check
    _
  $region23: #{value_network_forward.1} parent=0 // pred_check_branch
    %24 = sbr.rel (0) target = $region25
  $region24: #{value_network_forward.1} parent=0 // pred_region
    _
  $region25: #{value_network_forward.1} parent=0 // pred_fallthru
    _
  // Predicated region
  $region26: #{value_network_forward.1} parent=0 // pred_check
    _
  $region27: #{value_network_forward.1} parent=0 // pred_check_branch
    %26 = sbr.rel (0) target = $region29
  $region28: #{value_network_forward.1} parent=0 // pred_region
    _
  $region29: #{value_network_forward.1} parent=0 // pred_fallthru
    _
  %v28 = vld [vmem:[%s0] sm:$0xff]
  %v29 = vld [vmem:[%s0 + $0x8] sm:$0xff]
  %v30 = vld [vmem:[%s0 + $0x10] sm:$0xff]
  %v31 = vld [vmem:[%s0 + $0x18] sm:$0xff]
  %v32 = vld [vmem:[%s0 + $0x20] sm:$0xff]
  %v33 = vld [vmem:[%s0 + $0x28] sm:$0xff]
  %v34 = vld [vmem:[%s0 + $0x30] sm:$0xff]
  %v35 = vld [vmem:[%s0 + $0x38] sm:$0xff]
  %v36 = vld [vmem:[%s0 + $0x40] sm:$0xff]
  %v37 = vld [vmem:[%s0 + $0x48] sm:$0xff]
  %v38 = vld [vmem:[%s0 + $0x50] sm:$0xff]
  %v39 = vld [vmem:[%s0 + $0x58] sm:$0xff]
  %v40 = vld [vmem:[%s0 + $0x60] sm:$0xff]
  %v41 = vld [vmem:[%s0 + $0x68] sm:$0xff]
  %v42 = vld [vmem:[%s0 + $0x70] sm:$0xff]
  %v43 = vld [vmem:[%s0 + $0x78] sm:$0xff]
  %v44 = vpack.c.bf16 %v29, %v28
  %v45 = vpack.c.bf16 %v31, %v30
  %v46 = vpack.c.bf16 %v33, %v32
  %v47 = vpack.c.bf16 %v35, %v34
  %v48 = vpack.c.bf16 %v37, %v36
  %v49 = vpack.c.bf16 %v39, %v38
  %v50 = vpack.c.bf16 %v41, %v40
  %v51 = vpack.c.bf16 %v43, %v42
  %v52 = vld [vmem:[%s1] sm:$0xf]
  %v53 = vld [vmem:[%s1 + $0x4] sm:$0xf]
  %v54 = vld [vmem:[%s1 + $0x8] sm:$0xf]
  %v55 = vld [vmem:[%s1 + $0xc] sm:$0xf]
  %v60 = vunpack.c.l.b16 %v52
  %v61 = vunpack.c.l.b16 %v53
  %v62 = vunpack.c.l.b16 %v54
  %v63 = vunpack.c.l.b16 %v55
  %v64 = vpack.c.b16 %v61, %v60
  %v65 = vpack.c.b16 %v63, %v62
  %vm68 = vcmask 261120
  %v70 = vsel %vm68, %v44, 0
  %v73 = vsel %vm68, %v45, 0
  %v76 = vsel %vm68, %v46, 0
  %v79 = vsel %vm68, %v47, 0
  %v82 = vsel %vm68, %v48, 0
  %v85 = vsel %vm68, %v49, 0
  %v88 = vsel %vm68, %v50, 0
  %v91 = vsel %vm68, %v51, 0
  %93 = vmatprep.subr.bf16.mxu0 0
  %94 = vmatpush1.bf16.msra.mxu0 %v64
  %95 = vmatprep.subr.bf16.mxu0 0
  %96 = vmatpush1.bf16.msra.mxu0 %v65
  %97 = vmatprep.subr.bf16.mxu0 0
  %98 = vmatpush1.bf16.msra.mxu0 0
  %99 = vmatprep.subr.bf16.mxu0 0
  %100 = vmatpush1.bf16.msra.mxu0 0
  %101 = vmatprep.subr.bf16.mxu0 0
  %102 = vmatpush1.bf16.msra.mxu0 0
  %103 = vmatprep.subr.bf16.mxu0 0
  %104 = vmatpush1.bf16.msra.mxu0 0
  %105 = vmatprep.subr.bf16.mxu0 0
  %106 = vmatpush1.bf16.msra.mxu0 0
  %107 = vmatprep.subr.bf16.mxu0 0
  %108 = vmatpush1.bf16.msra.mxu0 0
  %109 = vmatprep.subr.bf16.mxu0 0
  %110 = vmatpush1.bf16.msra.mxu0 0
  %111 = vmatprep.subr.bf16.mxu0 0
  %112 = vmatpush1.bf16.msra.mxu0 0
  %113 = vmatprep.subr.bf16.mxu0 0
  %114 = vmatpush1.bf16.msra.mxu0 0
  %115 = vmatprep.subr.bf16.mxu0 0
  %116 = vmatpush1.bf16.msra.mxu0 0
  %117 = vmatprep.subr.bf16.mxu0 0
  %118 = vmatpush1.bf16.msra.mxu0 0
  %119 = vmatprep.subr.bf16.mxu0 0
  %120 = vmatpush1.bf16.msra.mxu0 0
  %121 = vmatprep.subr.bf16.mxu0 0
  %122 = vmatpush1.bf16.msra.mxu0 0
  %123 = vmatprep.subr.bf16.mxu0 0
  %124 = vmatpush1.bf16.msra.mxu0 0
  %125 = vmatprep.mubr.bf16.mxu0 0
  %126 = vmatmul.mubr.bf16.gmra.mrb[0].mxu0 %v70
  %v127 = vpop.f32.mrb[0].mxu0
  %v128 = vadd.f32 0.0, %v127
  %v129 = vpop.f32.mrb[0].mxu0
  %v130 = vpop.f32.mrb[0].mxu0
  %v131 = vadd.f32 0.0, %v130
  %v132 = vpop.f32.mrb[0].mxu0
  %133 = vmatprep.mubr.bf16.mxu0 0
  %134 = vmatmul.mubr.bf16.gmra.mrb[0].mxu0 %v73
  %v135 = vpop.f32.mrb[0].mxu0
  %v136 = vadd.f32 0.0, %v135
  %v137 = vpop.f32.mrb[0].mxu0
  %v138 = vpop.f32.mrb[0].mxu0
  %v139 = vadd.f32 0.0, %v138
  %v140 = vpop.f32.mrb[0].mxu0
  %141 = vmatprep.mubr.bf16.mxu0 0
  %142 = vmatmul.mubr.bf16.gmra.mrb[0].mxu0 %v76
  %v143 = vpop.f32.mrb[0].mxu0
  %v144 = vadd.f32 0.0, %v143
  %v145 = vpop.f32.mrb[0].mxu0
  %v146 = vpop.f32.mrb[0].mxu0
  %v147 = vadd.f32 0.0, %v146
  %v148 = vpop.f32.mrb[0].mxu0
  %149 = vmatprep.mubr.bf16.mxu0 0
  %150 = vmatmul.mubr.bf16.gmra.mrb[0].mxu0 %v79
  %v151 = vpop.f32.mrb[0].mxu0
  %v152 = vadd.f32 0.0, %v151
  %v153 = vpop.f32.mrb[0].mxu0
  %v154 = vpop.f32.mrb[0].mxu0
  %v155 = vadd.f32 0.0, %v154
  %v156 = vpop.f32.mrb[0].mxu0
  %157 = vmatprep.mubr.bf16.mxu0 0
  %158 = vmatmul.mubr.bf16.gmra.mrb[0].mxu0 %v82
  %v159 = vpop.f32.mrb[0].mxu0
  %v160 = vadd.f32 0.0, %v159
  %v161 = vpop.f32.mrb[0].mxu0
  %v162 = vpop.f32.mrb[0].mxu0
  %v163 = vadd.f32 0.0, %v162
  %v164 = vpop.f32.mrb[0].mxu0
  %165 = vmatprep.mubr.bf16.mxu0 0
  %166 = vmatmul.mubr.bf16.gmra.mrb[0].mxu0 %v85
  %v167 = vpop.f32.mrb[0].mxu0
  %v168 = vadd.f32 0.0, %v167
  %v169 = vpop.f32.mrb[0].mxu0
  %v170 = vpop.f32.mrb[0].mxu0
  %v171 = vadd.f32 0.0, %v170
  %v172 = vpop.f32.mrb[0].mxu0
  %173 = vmatprep.mubr.bf16.mxu0 0
  %174 = vmatmul.mubr.bf16.gmra.mrb[0].mxu0 %v88
  %v175 = vpop.f32.mrb[0].mxu0
  %v176 = vadd.f32 0.0, %v175
  %v177 = vpop.f32.mrb[0].mxu0
  %v178 = vpop.f32.mrb[0].mxu0
  %v179 = vadd.f32 0.0, %v178
  %v180 = vpop.f32.mrb[0].mxu0
  %181 = vmatprep.mubr.bf16.mxu0 0
  %182 = vmatmul.mubr.bf16.gmra.mrb[0].mxu0 %v91
  %v183 = vpop.f32.mrb[0].mxu0
  %v184 = vadd.f32 0.0, %v183
  %v185 = vpop.f32.mrb[0].mxu0
  %v186 = vpop.f32.mrb[0].mxu0
  %v187 = vadd.f32 0.0, %v186
  %v188 = vpop.f32.mrb[0].mxu0
  %189 = vdwg.mxu0
  %v190 = vpack.c.bf16 %v131, %v128
  %v191 = vpack.c.bf16 %v139, %v136
  %v192 = vpack.c.bf16 %v147, %v144
  %v193 = vpack.c.bf16 %v155, %v152
  %v194 = vpack.c.bf16 %v163, %v160
  %v195 = vpack.c.bf16 %v171, %v168
  %v196 = vpack.c.bf16 %v179, %v176
  %v197 = vpack.c.bf16 %v187, %v184
  %v198 = vld [vmem:[%s2] sm:$0x1]
  %v199 = vpack.c.bf16 %v198, %v198
  %v201 = vpack.i.b16 %v199, %v199
  %v203 = vlaneseq
  %v204 = vshrl.u32 %v203, 7
  %v205 = vsub.s32 0, %v204
  %v206 = vrot.slane %v201, %v205
  %v207 = vadd.bf16 %v190, %v206
  %v208 = vadd.bf16 %v191, %v206
  %v209 = vadd.bf16 %v192, %v206
  %v210 = vadd.bf16 %v193, %v206
  %v211 = vadd.bf16 %v194, %v206
  %v212 = vadd.bf16 %v195, %v206
  %v213 = vadd.bf16 %v196, %v206
  %v214 = vadd.bf16 %v197, %v206
  %v215 = vmax.bf16 %v207, 0
  %v216 = vmax.bf16 %v208, 0
  %v217 = vmax.bf16 %v209, 0
  %v218 = vmax.bf16 %v210, 0
  %v219 = vmax.bf16 %v211, 0
  %v220 = vmax.bf16 %v212, 0
  %v221 = vmax.bf16 %v213, 0
  %v222 = vmax.bf16 %v214, 0
  %v223 = vld [vmem:[%s3] sm:$0xf]
  %v224 = vld [vmem:[%s3 + $0x4] sm:$0xf]
  %v225 = vld [vmem:[%s3 + $0x8] sm:$0xf]
  %v226 = vld [vmem:[%s3 + $0xc] sm:$0xf]
  %v227 = vld [vmem:[%s3 + $0x10] sm:$0xf]
  %v228 = vld [vmem:[%s3 + $0x14] sm:$0xf]
  %v229 = vld [vmem:[%s3 + $0x18] sm:$0xf]
  %v230 = vld [vmem:[%s3 + $0x1c] sm:$0xf]
  %v231 = vld [vmem:[%s3 + $0x20] sm:$0xf]
  %v232 = vld [vmem:[%s3 + $0x24] sm:$0xf]
  %v233 = vld [vmem:[%s3 + $0x28] sm:$0xf]
  %v234 = vld [vmem:[%s3 + $0x2c] sm:$0xf]
  %v235 = vld [vmem:[%s3 + $0x30] sm:$0xf]
  %v236 = vld [vmem:[%s3 + $0x34] sm:$0xf]
  %v237 = vld [vmem:[%s3 + $0x38] sm:$0xf]
  %v238 = vld [vmem:[%s3 + $0x3c] sm:$0xf]
  %v255 = vunpack.c.l.b16 %v223
  %v256 = vunpack.c.l.b16 %v224
  %v257 = vunpack.c.l.b16 %v225
  %v258 = vunpack.c.l.b16 %v226
  %v259 = vunpack.c.l.b16 %v227
  %v260 = vunpack.c.l.b16 %v228
  %v261 = vunpack.c.l.b16 %v229
  %v262 = vunpack.c.l.b16 %v230
  %v263 = vunpack.c.l.b16 %v231
  %v264 = vunpack.c.l.b16 %v232
  %v265 = vunpack.c.l.b16 %v233
  %v266 = vunpack.c.l.b16 %v234
  %v267 = vunpack.c.l.b16 %v235
  %v268 = vunpack.c.l.b16 %v236
  %v269 = vunpack.c.l.b16 %v237
  %v270 = vunpack.c.l.b16 %v238
  %v271 = vpack.c.b16 %v256, %v255
  %v272 = vpack.c.b16 %v258, %v257
  %v273 = vpack.c.b16 %v260, %v259
  %v274 = vpack.c.b16 %v262, %v261
  %v275 = vpack.c.b16 %v264, %v263
  %v276 = vpack.c.b16 %v266, %v265
  %v277 = vpack.c.b16 %v268, %v267
  %v278 = vpack.c.b16 %v270, %v269
  %287 = vmatprep.subr.bf16.mxu0 0
  %288 = vmatpush1.bf16.msra.mxu0 %v271
  %289 = vmatprep.subr.bf16.mxu0 0
  %290 = vmatpush1.bf16.msra.mxu0 %v272
  %291 = vmatprep.subr.bf16.mxu0 0
  %292 = vmatpush1.bf16.msra.mxu0 %v273
  %293 = vmatprep.subr.bf16.mxu0 0
  %294 = vmatpush1.bf16.msra.mxu0 %v274
  %295 = vmatprep.subr.bf16.mxu0 0
  %296 = vmatpush1.bf16.msra.mxu0 %v275
  %297 = vmatprep.subr.bf16.mxu0 0
  %298 = vmatpush1.bf16.msra.mxu0 %v276
  %299 = vmatprep.subr.bf16.mxu0 0
  %300 = vmatpush1.bf16.msra.mxu0 %v277
  %301 = vmatprep.subr.bf16.mxu0 0
  %302 = vmatpush1.bf16.msra.mxu0 %v278
  %303 = vmatprep.subr.bf16.mxu0 0
  %304 = vmatpush1.bf16.msra.mxu0 0
  %305 = vmatprep.subr.bf16.mxu0 0
  %306 = vmatpush1.bf16.msra.mxu0 0
  %307 = vmatprep.subr.bf16.mxu0 0
  %308 = vmatpush1.bf16.msra.mxu0 0
  %309 = vmatprep.subr.bf16.mxu0 0
  %310 = vmatpush1.bf16.msra.mxu0 0
  %311 = vmatprep.subr.bf16.mxu0 0
  %312 = vmatpush1.bf16.msra.mxu0 0
  %313 = vmatprep.subr.bf16.mxu0 0
  %314 = vmatpush1.bf16.msra.mxu0 0
  %315 = vmatprep.subr.bf16.mxu0 0
  %316 = vmatpush1.bf16.msra.mxu0 0
  %317 = vmatprep.subr.bf16.mxu0 0
  %318 = vmatpush1.bf16.msra.mxu0 0
  %319 = vmatprep.mubr.bf16.mxu0 0
  %320 = vmatmul.mubr.bf16.gmra.mrb[0].mxu0 %v215
  %v321 = vpop.f32.mrb[0].mxu0
  %v322 = vadd.f32 0.0, %v321
  %v323 = vpop.f32.mrb[0].mxu0
  %v324 = vpop.f32.mrb[0].mxu0
  %v325 = vadd.f32 0.0, %v324
  %v326 = vpop.f32.mrb[0].mxu0
  %327 = vmatprep.mubr.bf16.mxu0 0
  %328 = vmatmul.mubr.bf16.gmra.mrb[0].mxu0 %v216
  %v329 = vpop.f32.mrb[0].mxu0
  %v330 = vadd.f32 0.0, %v329
  %v331 = vpop.f32.mrb[0].mxu0
  %v332 = vpop.f32.mrb[0].mxu0
  %v333 = vadd.f32 0.0, %v332
  %v334 = vpop.f32.mrb[0].mxu0
  %335 = vmatprep.mubr.bf16.mxu0 0
  %336 = vmatmul.mubr.bf16.gmra.mrb[0].mxu0 %v217
  %v337 = vpop.f32.mrb[0].mxu0
  %v338 = vadd.f32 0.0, %v337
  %v339 = vpop.f32.mrb[0].mxu0
  %v340 = vpop.f32.mrb[0].mxu0
  %v341 = vadd.f32 0.0, %v340
  %v342 = vpop.f32.mrb[0].mxu0
  %343 = vmatprep.mubr.bf16.mxu0 0
  %344 = vmatmul.mubr.bf16.gmra.mrb[0].mxu0 %v218
  %v345 = vpop.f32.mrb[0].mxu0
  %v346 = vadd.f32 0.0, %v345
  %v347 = vpop.f32.mrb[0].mxu0
  %v348 = vpop.f32.mrb[0].mxu0
  %v349 = vadd.f32 0.0, %v348
  %v350 = vpop.f32.mrb[0].mxu0
  %351 = vmatprep.mubr.bf16.mxu0 0
  %352 = vmatmul.mubr.bf16.gmra.mrb[0].mxu0 %v219
  %v353 = vpop.f32.mrb[0].mxu0
  %v354 = vadd.f32 0.0, %v353
  %v355 = vpop.f32.mrb[0].mxu0
  %v356 = vpop.f32.mrb[0].mxu0
  %v357 = vadd.f32 0.0, %v356
  %v358 = vpop.f32.mrb[0].mxu0
  %359 = vmatprep.mubr.bf16.mxu0 0
  %360 = vmatmul.mubr.bf16.gmra.mrb[0].mxu0 %v220
  %v361 = vpop.f32.mrb[0].mxu0
  %v362 = vadd.f32 0.0, %v361
  %v363 = vpop.f32.mrb[0].mxu0
  %v364 = vpop.f32.mrb[0].mxu0
  %v365 = vadd.f32 0.0, %v364
  %v366 = vpop.f32.mrb[0].mxu0
  %367 = vmatprep.mubr.bf16.mxu0 0
  %368 = vmatmul.mubr.bf16.gmra.mrb[0].mxu0 %v221
  %v369 = vpop.f32.mrb[0].mxu0
  %v370 = vadd.f32 0.0, %v369
  %v371 = vpop.f32.mrb[0].mxu0
  %v372 = vpop.f32.mrb[0].mxu0
  %v373 = vadd.f32 0.0, %v372
  %v374 = vpop.f32.mrb[0].mxu0
  %375 = vmatprep.mubr.bf16.mxu0 0
  %376 = vmatmul.mubr.bf16.gmra.mrb[0].mxu0 %v222
  %v377 = vpop.f32.mrb[0].mxu0
  %v378 = vadd.f32 0.0, %v377
  %v379 = vpop.f32.mrb[0].mxu0
  %v380 = vpop.f32.mrb[0].mxu0
  %v381 = vadd.f32 0.0, %v380
  %v382 = vpop.f32.mrb[0].mxu0
  %383 = vdwg.mxu0
  %v384 = vpack.c.bf16 %v325, %v322
  %v385 = vpack.c.bf16 %v333, %v330
  %v386 = vpack.c.bf16 %v341, %v338
  %v387 = vpack.c.bf16 %v349, %v346
  %v388 = vpack.c.bf16 %v357, %v354
  %v389 = vpack.c.bf16 %v365, %v362
  %v390 = vpack.c.bf16 %v373, %v370
  %v391 = vpack.c.bf16 %v381, %v378
  %v392 = vld [vmem:[%s4] sm:$0x1]
  %v393 = vpack.c.bf16 %v392, %v392
  %v395 = vpack.i.b16 %v393, %v393
  %v397 = vlaneseq
  %v398 = vshrl.u32 %v397, 7
  %v399 = vsub.s32 0, %v398
  %v400 = vrot.slane %v395, %v399
  %v401 = vadd.bf16 %v384, %v400
  %v402 = vadd.bf16 %v385, %v400
  %v403 = vadd.bf16 %v386, %v400
  %v404 = vadd.bf16 %v387, %v400
  %v405 = vadd.bf16 %v388, %v400
  %v406 = vadd.bf16 %v389, %v400
  %v407 = vadd.bf16 %v390, %v400
  %v408 = vadd.bf16 %v391, %v400
  %v409 = vmax.bf16 %v401, 0
  %v410 = vmax.bf16 %v402, 0
  %v411 = vmax.bf16 %v403, 0
  %v412 = vmax.bf16 %v404, 0
  %v413 = vmax.bf16 %v405, 0
  %v414 = vmax.bf16 %v406, 0
  %v415 = vmax.bf16 %v407, 0
  %v416 = vmax.bf16 %v408, 0
  %v417 = vld [vmem:[%s5] sm:$0x1]
  %v418 = vunpack.c.l.bf16 %v409
  %v419 = vunpack.c.h.bf16 %v409
  %v420 = vunpack.c.l.bf16 %v410
  %v421 = vunpack.c.h.bf16 %v410
  %v422 = vunpack.c.l.bf16 %v411
  %v423 = vunpack.c.h.bf16 %v411
  %v424 = vunpack.c.l.bf16 %v412
  %v425 = vunpack.c.h.bf16 %v412
  %v426 = vunpack.c.l.bf16 %v413
  %v427 = vunpack.c.h.bf16 %v413
  %v428 = vunpack.c.l.bf16 %v414
  %v429 = vunpack.c.h.bf16 %v414
  %v430 = vunpack.c.l.bf16 %v415
  %v431 = vunpack.c.h.bf16 %v415
  %v432 = vunpack.c.l.bf16 %v416
  %v433 = vunpack.c.h.bf16 %v416
  %v435 = vlaneseq
  %v436 = vshrl.u32 %v435, 7
  %v437 = vsub.s32 0, %v436
  %v438 = vrot.slane %v417, %v437
  %v440 = vmul.f32 %v418, %v438
  %v441 = vmul.f32 %v419, %v438
  %v442 = vmul.f32 %v420, %v438
  %v443 = vmul.f32 %v421, %v438
  %v444 = vmul.f32 %v422, %v438
  %v445 = vmul.f32 %v423, %v438
  %v446 = vmul.f32 %v424, %v438
  %v447 = vmul.f32 %v425, %v438
  %v448 = vmul.f32 %v426, %v438
  %v449 = vmul.f32 %v427, %v438
  %v450 = vmul.f32 %v428, %v438
  %v451 = vmul.f32 %v429, %v438
  %v452 = vmul.f32 %v430, %v438
  %v453 = vmul.f32 %v431, %v438
  %v454 = vmul.f32 %v432, %v438
  %v455 = vmul.f32 %v433, %v438
  %vm456 = vcmask 523264
  %v457 = vsel %vm456, %v440, 0.0
  %458 = vadd.xlane.f32.xlu0 %v457
  %v459 = vpop.xlane.xlu0 %458
  %v460 = vsel %vm456, %v441, 0.0
  %461 = vadd.xlane.f32.xlu0 %v460
  %v462 = vpop.xlane.xlu0 %461
  %v463 = vsel %vm456, %v442, 0.0
  %464 = vadd.xlane.f32.xlu0 %v463
  %v465 = vpop.xlane.xlu0 %464
  %v466 = vsel %vm456, %v443, 0.0
  %467 = vadd.xlane.f32.xlu0 %v466
  %v468 = vpop.xlane.xlu0 %467
  %v469 = vsel %vm456, %v444, 0.0
  %470 = vadd.xlane.f32.xlu0 %v469
  %v471 = vpop.xlane.xlu0 %470
  %v472 = vsel %vm456, %v445, 0.0
  %473 = vadd.xlane.f32.xlu0 %v472
  %v474 = vpop.xlane.xlu0 %473
  %v475 = vsel %vm456, %v446, 0.0
  %476 = vadd.xlane.f32.xlu0 %v475
  %v477 = vpop.xlane.xlu0 %476
  %v478 = vsel %vm456, %v447, 0.0
  %479 = vadd.xlane.f32.xlu0 %v478
  %v480 = vpop.xlane.xlu0 %479
  %v481 = vsel %vm456, %v448, 0.0
  %482 = vadd.xlane.f32.xlu0 %v481
  %v483 = vpop.xlane.xlu0 %482
  %v484 = vsel %vm456, %v449, 0.0
  %485 = vadd.xlane.f32.xlu0 %v484
  %v486 = vpop.xlane.xlu0 %485
  %v487 = vsel %vm456, %v450, 0.0
  %488 = vadd.xlane.f32.xlu0 %v487
  %v489 = vpop.xlane.xlu0 %488
  %v490 = vsel %vm456, %v451, 0.0
  %491 = vadd.xlane.f32.xlu0 %v490
  %v492 = vpop.xlane.xlu0 %491
  %v493 = vsel %vm456, %v452, 0.0
  %494 = vadd.xlane.f32.xlu0 %v493
  %v495 = vpop.xlane.xlu0 %494
  %v496 = vsel %vm456, %v453, 0.0
  %497 = vadd.xlane.f32.xlu0 %v496
  %v498 = vpop.xlane.xlu0 %497
  %v499 = vsel %vm456, %v454, 0.0
  %500 = vadd.xlane.f32.xlu0 %v499
  %v501 = vpop.xlane.xlu0 %500
  %v502 = vsel %vm456, %v455, 0.0
  %503 = vadd.xlane.f32.xlu0 %v502
  %v504 = vpop.xlane.xlu0 %503
  %s505 = sld [smem:[#allocation2]]
  %v506 = vstv %s505
  %v507 = vadd.f32 %v459, %v506
  %v508 = vadd.f32 %v462, %v506
  %v509 = vadd.f32 %v465, %v506
  %v510 = vadd.f32 %v468, %v506
  %v511 = vadd.f32 %v471, %v506
  %v512 = vadd.f32 %v474, %v506
  %v513 = vadd.f32 %v477, %v506
  %v514 = vadd.f32 %v480, %v506
  %v515 = vadd.f32 %v483, %v506
  %v516 = vadd.f32 %v486, %v506
  %v517 = vadd.f32 %v489, %v506
  %v518 = vadd.f32 %v492, %v506
  %v519 = vadd.f32 %v495, %v506
  %v520 = vadd.f32 %v498, %v506
  %v521 = vadd.f32 %v501, %v506
  %v522 = vadd.f32 %v504, %v506
  %v539 = vlaneseq
  %v540 = vand.u32 %v539, 127
  %v541 = vlaneseq
  %v542 = vshrl.u32 %v541, 7
  %v543 = vsub.s32 %v540, %v542
  %v544 = vrot.slane %v507, %v543
  %v545 = vadd.s32 %v540, 4294967288
  %v546 = vlaneseq
  %v547 = vshrl.u32 %v546, 7
  %v548 = vsub.s32 %v545, %v547
  %v549 = vrot.slane %v508, %v548
  %vm550 = vcmask 130112
  %v551 = vsel %vm550, %v549, %v544
  %v552 = vadd.s32 %v540, 4294967280
  %v553 = vlaneseq
  %v554 = vshrl.u32 %v553, 7
  %v555 = vsub.s32 %v552, %v554
  %v556 = vrot.slane %v509, %v555
  %vm557 = vcmask 195712
  %v558 = vsel %vm557, %v556, %v551
  %v559 = vadd.s32 %v540, 4294967272
  %v560 = vlaneseq
  %v561 = vshrl.u32 %v560, 7
  %v562 = vsub.s32 %v559, %v561
  %v563 = vrot.slane %v510, %v562
  %vm564 = vcmask 261312
  %v565 = vsel %vm564, %v563, %v558
  %v566 = vadd.s32 %v540, 4294967264
  %v567 = vlaneseq
  %v568 = vshrl.u32 %v567, 7
  %v569 = vsub.s32 %v566, %v568
  %v570 = vrot.slane %v511, %v569
  %vm571 = vcmask 326912
  %v572 = vsel %vm571, %v570, %v565
  %v573 = vadd.s32 %v540, 4294967256
  %v574 = vlaneseq
  %v575 = vshrl.u32 %v574, 7
  %v576 = vsub.s32 %v573, %v575
  %v577 = vrot.slane %v512, %v576
  %vm578 = vcmask 392512
  %v579 = vsel %vm578, %v577, %v572
  %v580 = vadd.s32 %v540, 4294967248
  %v581 = vlaneseq
  %v582 = vshrl.u32 %v581, 7
  %v583 = vsub.s32 %v580, %v582
  %v584 = vrot.slane %v513, %v583
  %vm585 = vcmask 458112
  %v586 = vsel %vm585, %v584, %v579
  %v587 = vadd.s32 %v540, 4294967240
  %v588 = vlaneseq
  %v589 = vshrl.u32 %v588, 7
  %v590 = vsub.s32 %v587, %v589
  %v591 = vrot.slane %v514, %v590
  %vm592 = vcmask 523712
  %v593 = vsel %vm592, %v591, %v586
  %v594 = vadd.s32 %v540, 4294967232
  %v595 = vlaneseq
  %v596 = vshrl.u32 %v595, 7
  %v597 = vsub.s32 %v594, %v596
  %v598 = vrot.slane %v515, %v597
  %vm599 = vcmask 589312
  %v600 = vsel %vm599, %v598, %v593
  %v601 = vadd.s32 %v540, 4294967224
  %v602 = vlaneseq
  %v603 = vshrl.u32 %v602, 7
  %v604 = vsub.s32 %v601, %v603
  %v605 = vrot.slane %v516, %v604
  %vm606 = vcmask 654912
  %v607 = vsel %vm606, %v605, %v600
  %v608 = vadd.s32 %v540, 4294967216
  %v609 = vlaneseq
  %v610 = vshrl.u32 %v609, 7
  %v611 = vsub.s32 %v608, %v610
  %v612 = vrot.slane %v517, %v611
  %vm613 = vcmask 720512
  %v614 = vsel %vm613, %v612, %v607
  %v615 = vadd.s32 %v540, 4294967208
  %v616 = vlaneseq
  %v617 = vshrl.u32 %v616, 7
  %v618 = vsub.s32 %v615, %v617
  %v619 = vrot.slane %v518, %v618
  %vm620 = vcmask 786112
  %v621 = vsel %vm620, %v619, %v614
  %v622 = vadd.s32 %v540, 4294967200
  %v623 = vlaneseq
  %v624 = vshrl.u32 %v623, 7
  %v625 = vsub.s32 %v622, %v624
  %v626 = vrot.slane %v519, %v625
  %vm627 = vcmask 851712
  %v628 = vsel %vm627, %v626, %v621
  %v629 = vadd.s32 %v540, 4294967192
  %v630 = vlaneseq
  %v631 = vshrl.u32 %v630, 7
  %v632 = vsub.s32 %v629, %v631
  %v633 = vrot.slane %v520, %v632
  %vm634 = vcmask 917312
  %v635 = vsel %vm634, %v633, %v628
  %v636 = vadd.s32 %v540, 4294967184
  %v637 = vlaneseq
  %v638 = vshrl.u32 %v637, 7
  %v639 = vsub.s32 %v636, %v638
  %v640 = vrot.slane %v521, %v639
  %vm641 = vcmask 982912
  %v642 = vsel %vm641, %v640, %v635
  %v643 = vadd.s32 %v540, 4294967176
  %v644 = vlaneseq
  %v645 = vshrl.u32 %v644, 7
  %v646 = vsub.s32 %v643, %v645
  %v647 = vrot.slane %v522, %v646
  %vm648 = vcmask 1048512
  %v649 = vsel %vm648, %v647, %v642
  %651 = vst [vmem:[%s7] sm:$0x1] %v649
  // Predicated region
  $region30: #{value_network_forward.1} parent=0 // pred_check
    _
  $region31: #{value_network_forward.1} parent=0 // pred_check_branch
    %653 = sbr.rel (0) target = $region33
  $region32: #{value_network_forward.1} parent=0 // pred_region
    _
  $region33: #{value_network_forward.1} parent=0 // pred_fallthru
    _
  // Predicated region
  $region34: #{value_network_forward.1} parent=0 // pred_check
    _
  $region35: #{value_network_forward.1} parent=0 // pred_check_branch
    %655 = sbr.rel (0) target = $region37
  $region36: #{value_network_forward.1} parent=0 // pred_region
    _
  $region37: #{value_network_forward.1} parent=0 // pred_fallthru
    _

</llo_original>
